<compile_context>
chip_gen: v7x
topology: tpu7x:2x2x1
jax: 0.10.0
libtpu: 0.0.40
codegen_flags: <defaults>
</compile_context>

<pallas_src>
import jax
import jax.numpy as jnp
from jax.experimental import pallas as pl
from jax.experimental.pallas import tpu as pltpu


def mlp_kernel(x_ref, w1_ref, b1_ref, w2_ref, b2_ref, o_ref):
    # x: (B, IN) native dtype -> cast to f32 in-kernel (matches x.float()).
    x = x_ref[...].astype(jnp.float32)
    # w1: (IN, H) pre-transposed, b1: (1, H)
    h = jnp.dot(x, w1_ref[...], preferred_element_type=jnp.float32) + b1_ref[...]
    h = jnp.maximum(h, 0.0)                                # relu(fc1(x.float()))
    # w2: (H, O) pre-transposed, b2: (1, O)
    o = jnp.dot(h, w2_ref[...], preferred_element_type=jnp.float32) + b2_ref[...]
    o_ref[...] = jnp.maximum(o, 0.0)                       # relu(fc2(...))


def prepare_params(w1, b1, w2, b2):
    """One-time weight preparation (hoisted out of the per-call path).

    Takes PyTorch-style (out_features, in_features) weights and (out_features,)
    biases; returns f32, pre-transposed (in_features, out_features) weights and
    (1, out_features) biases ready to feed the kernel directly.
    """
    w1t = jnp.asarray(w1, jnp.float32).T                 # (IN, H)
    b1r = jnp.asarray(b1, jnp.float32).reshape(1, -1)    # (1, H)
    w2t = jnp.asarray(w2, jnp.float32).T                 # (H, O)
    b2r = jnp.asarray(b2, jnp.float32).reshape(1, -1)    # (1, O)
    return w1t, b1r, w2t, b2r


def net_forward(x, w1t, b1, w2t, b2):
    """Forward pass of Net: relu(fc2(relu(fc1(x.float())))).

    Expects pre-prepared params from `prepare_params`; x may be any real dtype.
    """
    B = x.shape[0]
    O = w2t.shape[1]
    vmem = pl.BlockSpec(memory_space=pltpu.MemorySpace.VMEM)
    return pl.pallas_call(
        mlp_kernel,
        out_shape=jax.ShapeDtypeStruct((B, O), jnp.float32),
        in_specs=[vmem] * 5,
        out_specs=vmem,
    )(x, w1t, b1, w2t, b2)


def init_linear(key, out_features, in_features):
    # PyTorch-default-style init: U(-1/sqrt(fan_in), 1/sqrt(fan_in))
    kw, kb = jax.random.split(key)
    bound = 1.0 / jnp.sqrt(jnp.float32(in_features))
    w = jax.random.uniform(kw, (out_features, in_features), jnp.float32, -bound, bound)
    b = jax.random.uniform(kb, (out_features,), jnp.float32, -bound, bound)
    return w, b


if __name__ == "__main__":
    key = jax.random.PRNGKey(0)
    k_x, k_fc1, k_fc2 = jax.random.split(key, 3)

    batch, input_size = 8, 4          # Net(input_size=4)
    hidden, out_size = 5, 1           # fc1: in->5, fc2: 5->1 per the module

    x = jax.random.normal(k_x, (batch, input_size), jnp.float32)
    w1, b1 = init_linear(k_fc1, hidden, input_size)
    w2, b2 = init_linear(k_fc2, out_size, hidden)

    # One-time prep (outside the per-call path), then the jitted forward is
    # just the pallas_call with no wrapper-side weight HLOs.
    params = prepare_params(w1, b1, w2, b2)
    fwd = jax.jit(net_forward)

    out = jax.block_until_ready(fwd(x, *params))

    # Pure-JAX reference check against the original PyTorch-form weights.
    ref = jnp.maximum(jnp.maximum(x @ w1.T + b1, 0.0) @ w2.T + b2, 0.0)
    assert out.shape == (batch, out_size)
    assert jnp.allclose(out, ref, atol=1e-5, rtol=1e-5)

    print("KERNEL_OK")
</pallas_src>

<mosaic_0001>
module attributes {stable_mosaic.version = 11 : i64} {
  func.func @mlp_kernel(%arg0: memref<8x4xf32, #tpu.memory_space<vmem>>, %arg1: memref<4x5xf32, #tpu.memory_space<vmem>>, %arg2: memref<1x5xf32, #tpu.memory_space<vmem>>, %arg3: memref<5x1xf32, #tpu.memory_space<vmem>>, %arg4: memref<1x1xf32, #tpu.memory_space<vmem>>, %arg5: memref<8x1xf32, #tpu.memory_space<vmem>>) attributes {dimension_semantics = [], scalar_prefetch = 0 : i64, scratch_operands = 0 : i64, tpu.core_type = #tpu.core_type<tc>} {
    %c0 = arith.constant 0 : index
    %c0_0 = arith.constant 0 : index
    %0 = vector.load %arg0[%c0, %c0_0] : memref<8x4xf32, #tpu.memory_space<vmem>>, vector<8x4xf32>
    %c0_1 = arith.constant 0 : index
    %c0_2 = arith.constant 0 : index
    %1 = vector.load %arg1[%c0_1, %c0_2] : memref<4x5xf32, #tpu.memory_space<vmem>>, vector<4x5xf32>
    %cst = arith.constant dense<0.000000e+00> : vector<8x5xf32>
    %2 = tpu.matmul %0, %1, %cst {dimension_numbers = #tpu.dot_dimension_numbers<[1], [0], [0], [1], [0, 0, 1, 1], [], []>} : vector<8x4xf32>, vector<4x5xf32>, vector<8x5xf32> -> vector<8x5xf32>
    %c0_3 = arith.constant 0 : index
    %c0_4 = arith.constant 0 : index
    %3 = vector.load %arg2[%c0_3, %c0_4] : memref<1x5xf32, #tpu.memory_space<vmem>>, vector<1x5xf32>
    %4 = vector.broadcast %3 : vector<1x5xf32> to vector<8x5xf32>
    %5 = arith.addf %2, %4 : vector<8x5xf32>
    %cst_5 = arith.constant 0.000000e+00 : f32
    %6 = vector.broadcast %cst_5 : f32 to vector<8x5xf32>
    %7 = arith.maximumf %5, %6 : vector<8x5xf32>
    %c0_6 = arith.constant 0 : index
    %c0_7 = arith.constant 0 : index
    %8 = vector.load %arg3[%c0_6, %c0_7] : memref<5x1xf32, #tpu.memory_space<vmem>>, vector<5x1xf32>
    %cst_8 = arith.constant dense<0.000000e+00> : vector<8x1xf32>
    %9 = tpu.matmul %7, %8, %cst_8 {dimension_numbers = #tpu.dot_dimension_numbers<[1], [0], [0], [1], [0, 0, 1, 1], [], []>} : vector<8x5xf32>, vector<5x1xf32>, vector<8x1xf32> -> vector<8x1xf32>
    %c0_9 = arith.constant 0 : index
    %c0_10 = arith.constant 0 : index
    %10 = vector.load %arg4[%c0_9, %c0_10] : memref<1x1xf32, #tpu.memory_space<vmem>>, vector<1x1xf32>
    %11 = vector.broadcast %10 : vector<1x1xf32> to vector<8x1xf32>
    %12 = arith.addf %9, %11 : vector<8x1xf32>
    %cst_11 = arith.constant 0.000000e+00 : f32
    %13 = vector.broadcast %cst_11 : f32 to vector<8x1xf32>
    %14 = arith.maximumf %12, %13 : vector<8x1xf32>
    %c0_12 = arith.constant 0 : index
    %c0_13 = arith.constant 0 : index
    %15 = vector.load %arg5[%c0_12, %c0_13] : memref<8x1xf32, #tpu.memory_space<vmem>>, vector<8x1xf32>
    tpu.vector_store %arg5[%c0_12, %c0_13], %14 {strides = array<i32>} : memref<8x1xf32, #tpu.memory_space<vmem>>, vector<8x1xf32>,
    return
  }
}

</mosaic_0001>

<llo_original>
// kernel: net_forward.1
$region0: #{net_forward.1}
  #allocation0 [shape = 'u32[]', space=smem, size = 0x4, offset = 0x4, fixed_abs, tag = 'smem constant byte address 0x4 - core index']
  #allocation1 [shape = 'u32[144,128]{1,0:T(1,128)}', space=vmem, size = 0x12000, scoped, tag = 'internal scratch']
  #allocation2 [shape = 'f32[1,1]{1,0:T(1,128)S(1)}', space=vmem, size = 0x200, scoped, tag = 'scoped memory for net_forward.1']
  %s0 = inlined_call_operand.vmem [shape: f32[8,4], index: 0, kind: input, shape index: {}]
  %s1 = inlined_call_operand.vmem [shape: f32[4,5], index: 1, kind: input, shape index: {}]
  %s2 = inlined_call_operand.vmem [shape: f32[1,5], index: 2, kind: input, shape index: {}]
  %s3 = inlined_call_operand.vmem [shape: f32[5,1], index: 3, kind: input, shape index: {}]
  %s4 = inlined_call_operand.<no memory space> [shape: f32[1,1], index: 4, kind: input, shape index: {}]
  %s5 = inlined_call_operand.vmem [shape: f32[8,1], index: 5, kind: output, shape index: {}]
  %s6 = sld [smem:[#allocation0]]
  $region30: #{net_forward.1} parent=0
    _
  %s8 = ssub.s32 1, %s6
  %s9 = scalar_select 0, %s8, %s6
  %v10 = vstv %s4
  %11 = vst [vmem:[#allocation2] sm:$0x1] %v10
  // Predicated region
  $region2: #{net_forward.1} parent=0 // pred_check
    _
  $region3: #{net_forward.1} parent=0 // pred_check_branch
    %13 = sbr.rel (0) target = $region5
  $region4: #{net_forward.1} parent=0 // pred_region
    _
  $region5: #{net_forward.1} parent=0 // pred_fallthru
    _
  // Predicated region
  $region6: #{net_forward.1} parent=0 // pred_check
    _
  $region7: #{net_forward.1} parent=0 // pred_check_branch
    %15 = sbr.rel (0) target = $region9
  $region8: #{net_forward.1} parent=0 // pred_region
    _
  $region9: #{net_forward.1} parent=0 // pred_fallthru
    _
  // Predicated region
  $region10: #{net_forward.1} parent=0 // pred_check
    _
  $region11: #{net_forward.1} parent=0 // pred_check_branch
    %17 = sbr.rel (0) target = $region13
  $region12: #{net_forward.1} parent=0 // pred_region
    _
  $region13: #{net_forward.1} parent=0 // pred_fallthru
    _
  // Predicated region
  $region14: #{net_forward.1} parent=0 // pred_check
    _
  $region15: #{net_forward.1} parent=0 // pred_check_branch
    %19 = sbr.rel (0) target = $region17
  $region16: #{net_forward.1} parent=0 // pred_region
    _
  $region17: #{net_forward.1} parent=0 // pred_fallthru
    _
  // Predicated region
  $region18: #{net_forward.1} parent=0 // pred_check
    _
  $region19: #{net_forward.1} parent=0 // pred_check_branch
    %21 = sbr.rel (0) target = $region21
  $region20: #{net_forward.1} parent=0 // pred_region
    _
  $region21: #{net_forward.1} parent=0 // pred_fallthru
    _
  %v22 = vld [vmem:[%s0] sm:$0xff]
  %v23 = vld [vmem:[%s1] sm:$0xf]
  %v24 = vld [vmem:[%s2] sm:$0x1]
  %v26 = vlaneseq
  %v27 = vshrl.u32 %v26, 7
  %v28 = vsub.s32 0, %v27
  %v29 = vrot.slane %v24, %v28
  %vm31 = vcmask 31744
  %v33 = vsel %vm31, %v22, 0
  %vm35 = vcmask 1043456
  %v37 = vsel %vm35, %v23, 0
  %39 = vmatprep.subr.mxu0 0.0
  %40 = vmatpush1.msra.mxu0 %v37
  %41 = vmatprep.subr.mxu0 0.0
  %42 = vmatpush1.msra.mxu0 0.0
  %43 = vmatprep.subr.mxu0 0.0
  %44 = vmatpush1.msra.mxu0 0.0
  %45 = vmatprep.subr.mxu0 0.0
  %46 = vmatpush1.msra.mxu0 0.0
  %47 = vmatprep.subr.mxu0 0.0
  %48 = vmatpush1.msra.mxu0 0.0
  %49 = vmatprep.subr.mxu0 0.0
  %50 = vmatpush1.msra.mxu0 0.0
  %51 = vmatprep.subr.mxu0 0.0
  %52 = vmatpush1.msra.mxu0 0.0
  %53 = vmatprep.subr.mxu0 0.0
  %54 = vmatpush1.msra.mxu0 0.0
  %55 = vmatprep.subr.mxu0 0.0
  %56 = vmatpush1.msra.mxu0 0.0
  %57 = vmatprep.subr.mxu0 0.0
  %58 = vmatpush1.msra.mxu0 0.0
  %59 = vmatprep.subr.mxu0 0.0
  %60 = vmatpush1.msra.mxu0 0.0
  %61 = vmatprep.subr.mxu0 0.0
  %62 = vmatpush1.msra.mxu0 0.0
  %63 = vmatprep.subr.mxu0 0.0
  %64 = vmatpush1.msra.mxu0 0.0
  %65 = vmatprep.subr.mxu0 0.0
  %66 = vmatpush1.msra.mxu0 0.0
  %67 = vmatprep.subr.mxu0 0.0
  %68 = vmatpush1.msra.mxu0 0.0
  %69 = vmatprep.subr.mxu0 0.0
  %70 = vmatpush1.msra.mxu0 0.0
  %71 = vmatprep.subr.mxu0 0.0
  %72 = vmatpush1.msra.mxu0 0.0
  %73 = vmatprep.subr.mxu0 0.0
  %74 = vmatpush1.msra.mxu0 0.0
  %75 = vmatprep.subr.mxu0 0.0
  %76 = vmatpush1.msra.mxu0 0.0
  %77 = vmatprep.subr.mxu0 0.0
  %78 = vmatpush1.msra.mxu0 0.0
  %79 = vmatprep.subr.mxu0 0.0
  %80 = vmatpush1.msra.mxu0 0.0
  %81 = vmatprep.subr.mxu0 0.0
  %82 = vmatpush1.msra.mxu0 0.0
  %83 = vmatprep.subr.mxu0 0.0
  %84 = vmatpush1.msra.mxu0 0.0
  %85 = vmatprep.subr.mxu0 0.0
  %86 = vmatpush1.msra.mxu0 0.0
  %87 = vmatprep.subr.mxu0 0.0
  %88 = vmatpush1.msra.mxu0 0.0
  %89 = vmatprep.subr.mxu0 0.0
  %90 = vmatpush1.msra.mxu0 0.0
  %91 = vmatprep.subr.mxu0 0.0
  %92 = vmatpush1.msra.mxu0 0.0
  %93 = vmatprep.subr.mxu0 0.0
  %94 = vmatpush1.msra.mxu0 0.0
  %95 = vmatprep.subr.mxu0 0.0
  %96 = vmatpush1.msra.mxu0 0.0
  %97 = vmatprep.subr.mxu0 0.0
  %98 = vmatpush1.msra.mxu0 0.0
  %99 = vmatprep.subr.mxu0 0.0
  %100 = vmatpush1.msra.mxu0 0.0
  %101 = vmatprep.subr.mxu0 0.0
  %102 = vmatpush1.msra.mxu0 0.0
  %103 = vmatprep.mubr.f32.mxu0 0.0
  %104 = vmatmul.mubr.f32.gmra.mrb[0].mxu0 %v33
  %v105 = vpop.f32.mrb[0].mxu0
  %v106 = vadd.f32 %v29, %v105
  %v107 = vpop.f32.mrb[0].mxu0
  %108 = vdwg.mxu0
  %v109 = vmax.f32 %v106, 0.0
  %v110 = vld [vmem:[%s3] sm:$0x1f]
  %v111 = vld [vmem:[#allocation2] sm:$0x1]
  %v113 = vlaneseq
  %v114 = vshrl.u32 %v113, 7
  %v115 = vsub.s32 0, %v114
  %v116 = vrot.slane %v111, %v115
  %vm118 = vcmask 39936
  %v120 = vsel %vm118, %v109, 0
  %vm122 = vcmask 1044480
  %v124 = vsel %vm122, %v110, 0
  %126 = vmatprep.subr.mxu0 0.0
  %127 = vmatpush1.msra.mxu0 %v124
  %128 = vmatprep.subr.mxu0 0.0
  %129 = vmatpush1.msra.mxu0 0.0
  %130 = vmatprep.subr.mxu0 0.0
  %131 = vmatpush1.msra.mxu0 0.0
  %132 = vmatprep.subr.mxu0 0.0
  %133 = vmatpush1.msra.mxu0 0.0
  %134 = vmatprep.subr.mxu0 0.0
  %135 = vmatpush1.msra.mxu0 0.0
  %136 = vmatprep.subr.mxu0 0.0
  %137 = vmatpush1.msra.mxu0 0.0
  %138 = vmatprep.subr.mxu0 0.0
  %139 = vmatpush1.msra.mxu0 0.0
  %140 = vmatprep.subr.mxu0 0.0
  %141 = vmatpush1.msra.mxu0 0.0
  %142 = vmatprep.subr.mxu0 0.0
  %143 = vmatpush1.msra.mxu0 0.0
  %144 = vmatprep.subr.mxu0 0.0
  %145 = vmatpush1.msra.mxu0 0.0
  %146 = vmatprep.subr.mxu0 0.0
  %147 = vmatpush1.msra.mxu0 0.0
  %148 = vmatprep.subr.mxu0 0.0
  %149 = vmatpush1.msra.mxu0 0.0
  %150 = vmatprep.subr.mxu0 0.0
  %151 = vmatpush1.msra.mxu0 0.0
  %152 = vmatprep.subr.mxu0 0.0
  %153 = vmatpush1.msra.mxu0 0.0
  %154 = vmatprep.subr.mxu0 0.0
  %155 = vmatpush1.msra.mxu0 0.0
  %156 = vmatprep.subr.mxu0 0.0
  %157 = vmatpush1.msra.mxu0 0.0
  %158 = vmatprep.subr.mxu0 0.0
  %159 = vmatpush1.msra.mxu0 0.0
  %160 = vmatprep.subr.mxu0 0.0
  %161 = vmatpush1.msra.mxu0 0.0
  %162 = vmatprep.subr.mxu0 0.0
  %163 = vmatpush1.msra.mxu0 0.0
  %164 = vmatprep.subr.mxu0 0.0
  %165 = vmatpush1.msra.mxu0 0.0
  %166 = vmatprep.subr.mxu0 0.0
  %167 = vmatpush1.msra.mxu0 0.0
  %168 = vmatprep.subr.mxu0 0.0
  %169 = vmatpush1.msra.mxu0 0.0
  %170 = vmatprep.subr.mxu0 0.0
  %171 = vmatpush1.msra.mxu0 0.0
  %172 = vmatprep.subr.mxu0 0.0
  %173 = vmatpush1.msra.mxu0 0.0
  %174 = vmatprep.subr.mxu0 0.0
  %175 = vmatpush1.msra.mxu0 0.0
  %176 = vmatprep.subr.mxu0 0.0
  %177 = vmatpush1.msra.mxu0 0.0
  %178 = vmatprep.subr.mxu0 0.0
  %179 = vmatpush1.msra.mxu0 0.0
  %180 = vmatprep.subr.mxu0 0.0
  %181 = vmatpush1.msra.mxu0 0.0
  %182 = vmatprep.subr.mxu0 0.0
  %183 = vmatpush1.msra.mxu0 0.0
  %184 = vmatprep.subr.mxu0 0.0
  %185 = vmatpush1.msra.mxu0 0.0
  %186 = vmatprep.subr.mxu0 0.0
  %187 = vmatpush1.msra.mxu0 0.0
  %188 = vmatprep.subr.mxu0 0.0
  %189 = vmatpush1.msra.mxu0 0.0
  %190 = vmatprep.mubr.f32.mxu0 0.0
  %191 = vmatmul.mubr.f32.gmra.mrb[0].mxu0 %v120
  %v192 = vpop.f32.mrb[0].mxu0
  %v193 = vadd.f32 %v116, %v192
  %v194 = vpop.f32.mrb[0].mxu0
  %195 = vdwg.mxu0
  %v196 = vmax.f32 %v193, 0.0
  %vm197 = vcmask 7168
  %198 = vst.msk [vmem:[%s5] sm:$0xff] %vm197, %v196
  // Predicated region
  $region22: #{net_forward.1} parent=0 // pred_check
    _
  $region23: #{net_forward.1} parent=0 // pred_check_branch
    %200 = sbr.rel (0) target = $region25
  $region24: #{net_forward.1} parent=0 // pred_region
    _
  $region25: #{net_forward.1} parent=0 // pred_fallthru
    _
  // Predicated region
  $region26: #{net_forward.1} parent=0 // pred_check
    _
  $region27: #{net_forward.1} parent=0 // pred_check_branch
    %202 = sbr.rel (0) target = $region29
  $region28: #{net_forward.1} parent=0 // pred_region
    _
  $region29: #{net_forward.1} parent=0 // pred_fallthru
    _

</llo_original>
